<compile_context>
chip_gen: v5e
topology: v5e:2x2
jax: 0.10.0
libtpu: 0.0.40
codegen_flags: <defaults>
</compile_context>

<pallas_src>
import functools
import math

import jax
import jax.numpy as jnp
import numpy as np
from jax.experimental import pallas as pl
from jax.experimental.pallas import tpu as pltpu

_NEG = -1.0e30  # bias for padded vocab columns: exp() -> 0, never the row max


def _round_up(x, m):
    return ((x + m - 1) // m) * m


def _vmem_capacity_bytes():
    try:
        return int(pltpu.get_tpu_info().vmem_capacity_bytes)
    except Exception:
        return 64 << 20  # conservative fallback: v7x per-TensorCore VMEM


# --------------------------------------------------------------------------
# Pass 1: per-(V tile, B tile) logits + per-tile logsumexp stats.
# --------------------------------------------------------------------------
def _ensemble_logits_kernel(h_ref, w_ref, b_ref, acc_ref, lse_ref, *,
                            num_models, raw_probs):
    """h_ref  : (K, b_tile, H)      compute dtype (bf16/f32)
       w_ref  : (K, H, V_tile)      compute dtype, pre-transposed (MXU-ready)
       b_ref  : (K, 1, V_tile)      fp32
       acc_ref: (b_tile, V_tile)    fp32 mean_k(logits)        [raw_probs=False]
                (K, b_tile, V_tile) fp32 per-model logits      [raw_probs=True]
       lse_ref: (1, K, b_tile, 1)   fp32 per-tile logsumexp stats m + log(s)
    """
    inv_k = 1.0 / num_models
    for k in range(num_models):  # K is small and static -> fully unrolled
        logits = jnp.dot(h_ref[k], w_ref[k],
                         preferred_element_type=jnp.float32) + b_ref[k]
        # Per-(model, row) logsumexp stats for this V tile; combined exactly
        # across V tiles in the wrapper with a logsumexp (flash-style).
        m_t = jnp.max(logits, axis=-1, keepdims=True)              # (b_tile,1)
        s_t = jnp.sum(jnp.exp(logits - m_t), axis=-1, keepdims=True)
        lse_ref[0, k] = m_t + jnp.log(s_t)
        if raw_probs:
            acc_ref[k] = logits
        else:
            # 1/K folded into the accumulation -> no finalize rescale pass.
            if k == 0:
                acc_ref[...] = logits * inv_k
            else:
                acc_ref[...] = acc_ref[...] + logits * inv_k


# --------------------------------------------------------------------------
# Pass 2: finalize.
# --------------------------------------------------------------------------
def _finalize_mean_kernel(acc_ref, mlse_ref, out_ref):
    # mean_k(log_softmax_k) = mean_k(logits_k) - mean_k(lse_k)
    out_ref[...] = acc_ref[...] - mlse_ref[...]


def _finalize_raw_kernel(logits_ref, lse_ref, out_ref, *, num_models):
    # log(mean_k softmax_k) = logsumexp_k(logits_k - lse_k) - log K,
    # computed stably across the small static ensemble axis.
    x = logits_ref[...] - lse_ref[...]              # (K, b_tile, V_tile) log p_k
    m = jnp.max(x, axis=0)
    s = jnp.sum(jnp.exp(x - m[None]), axis=0)
    out_ref[...] = m + jnp.log(s) - math.log(num_models)


# --------------------------------------------------------------------------
# Wrapper.
# --------------------------------------------------------------------------
def ensemble_generator(hidden, weights, biases, *, raw_probs=False,
                       compute_dtype=jnp.bfloat16, b_tile=None, v_tile=None):
    """hidden: [K, B, H], weights: [K, V, H] (PyTorch out x in), biases: [K, V]
    -> [B, V] fp32 averaged target distribution.

    compute_dtype is the matmul streaming dtype for hidden/weights (bf16
    default halves the dominant weight HBM traffic; pass jnp.float32 for
    fp32-faithful logits -- expect ~1e-2-level log-prob deltas with bf16).
    Bias add, logsumexp and averaging are always fp32.
    """
    K, B, H = hidden.shape
    Kw, V, Hw = weights.shape
    assert K == Kw and H == Hw and biases.shape == (K, V)

    cbytes = jnp.dtype(compute_dtype).itemsize
    vmem_cap = _vmem_capacity_bytes()
    acc_rows = K if raw_probs else 1

    # ---- tile selection from an explicit VMEM budget (~55% of capacity).
    if b_tile is None:
        b_tile = 256  # >= DMA->MXU-bound thresholds (~240 v5e / ~310 v7x-TC)
    b_tile = max(8, _round_up(min(b_tile, _round_up(B, 8)), 8))
    b_pad = _round_up(B, b_tile)
    num_b_tiles = b_pad // b_tile

    v128 = _round_up(V, 128)
    if v_tile is None:
        budget = int(0.55 * vmem_cap)
        fixed = 2 * K * b_tile * H * cbytes          # hidden block (dbl-buffered)
        fixed += 2 * K * b_tile * 4                  # lse stats block
        per_v = 2 * K * H * cbytes                   # weight block
        per_v += 2 * K * 4                           # bias block
        per_v += 2 * acc_rows * b_tile * 4           # acc output block
        per_v += 4 * b_tile * 4                      # fp32 temporaries
        v_tile = ((budget - fixed) // max(per_v, 1)) // 128 * 128
    v_tile = max(128, _round_up(v_tile, 128))
    v_tile = min(v_tile, v128, 8192)
    v_pad = _round_up(V, v_tile)
    num_v_tiles = v_pad // v_tile

    # ---- one-time layout / dtype prep (wrapper side).
    # TODO(synk): on v7x, stream weights as fp8 (e4m3) with per-model scales
    # folded into the bias to halve weight HBM traffic further.
    weights_t = jnp.transpose(weights, (0, 2, 1)).astype(compute_dtype)  # (K,H,V)
    hidden_c = hidden.astype(compute_dtype)
    biases3 = biases.reshape(K, 1, V).astype(jnp.float32)

    if b_pad != B:
        hidden_c = jnp.pad(hidden_c, ((0, 0), (0, b_pad - B), (0, 0)))
    if v_pad != V:
        weights_t = jnp.pad(weights_t, ((0, 0), (0, 0), (0, v_pad - V)))
        # Padded vocab columns get a huge negative bias so they contribute
        # nothing to the per-model logsumexp / softmax.
        biases3 = jnp.pad(biases3, ((0, 0), (0, 0), (0, v_pad - V)),
                          constant_values=_NEG)

    def _vmem_limit(estimate):
        lim = int(min(0.85 * vmem_cap, 1.5 * estimate + (4 << 20)))
        return max(lim, 32 << 20)

    main_est = (2 * K * b_tile * H * cbytes            # hidden
                + 2 * K * H * v_tile * cbytes          # weights
                + 2 * K * v_tile * 4                   # bias
                + 2 * acc_rows * b_tile * v_tile * 4   # acc output
                + 2 * K * b_tile * 4                   # lse stats output
                + 4 * b_tile * v_tile * 4)             # temporaries
    main_vmem = _vmem_limit(main_est)

    if raw_probs:
        acc_shape = (K, b_pad, v_pad)
        acc_spec = pl.BlockSpec((K, b_tile, v_tile), lambda j, i: (0, i, j))
    else:
        acc_shape = (b_pad, v_pad)
        acc_spec = pl.BlockSpec((b_tile, v_tile), lambda j, i: (i, j))

    # ---- Pass 1.
    acc, lse_part = pl.pallas_call(
        functools.partial(_ensemble_logits_kernel, num_models=K,
                          raw_probs=raw_probs),
        out_shape=(jax.ShapeDtypeStruct(acc_shape, jnp.float32),
                   jax.ShapeDtypeStruct((num_v_tiles, K, b_pad, 1),
                                        jnp.float32)),
        grid_spec=pltpu.PrefetchScalarGridSpec(
            num_scalar_prefetch=0,
            # V outermost: weight/bias blocks (index depends only on j) are
            # DMA'd once per V tile and stay resident across the inner B sweep.
            grid=(num_v_tiles, num_b_tiles),
            in_specs=[
                pl.BlockSpec((K, b_tile, H), lambda j, i: (0, i, 0)),   # hidden
                pl.BlockSpec((K, H, v_tile), lambda j, i: (0, 0, j)),   # W^T
                pl.BlockSpec((K, 1, v_tile), lambda j, i: (0, 0, j)),   # bias
            ],
            out_specs=(
                acc_spec,
                pl.BlockSpec((1, K, b_tile, 1), lambda j, i: (j, 0, i, 0)),
            ),
        ),
        compiler_params=pltpu.CompilerParams(
            # No cross-step carries and every output block is written exactly
            # once, so the B axis is iteration-order independent.
            # TODO(synk): use pltpu.CORE_PARALLEL / pl.core_map on v7x for
            # guaranteed 2-TensorCore sharding of the B axis.
            # TODO(synk): sweep pl.Buffered(3) on hidden/weight specs if
            # profiling shows exposed DMA at small b_tile.
            dimension_semantics=("arbitrary", "parallel"),
            vmem_limit_bytes=main_vmem,
        ),
    )(hidden_c, weights_t, biases3)

    # ---- exact per-model logsumexp over the vocab (combine per-tile stats).
    lse = jax.nn.logsumexp(lse_part[..., 0], axis=0)          # (K, b_pad)

    # ---- Pass 2: finalize.
    fin_grid = (num_b_tiles, num_v_tiles)
    slab = b_tile * v_tile * 4
    if raw_probs:
        fin_est = (2 * K + 2 + (K + 2)) * slab + 2 * K * b_tile * 4
        out = pl.pallas_call(
            functools.partial(_finalize_raw_kernel, num_models=K),
            out_shape=jax.ShapeDtypeStruct((b_pad, v_pad), jnp.float32),
            grid_spec=pltpu.PrefetchScalarGridSpec(
                num_scalar_prefetch=0,
                grid=fin_grid,
                in_specs=[
                    pl.BlockSpec((K, b_tile, v_tile), lambda i, j: (0, i, j)),
                    pl.BlockSpec((K, b_tile, 1), lambda i, j: (0, i, 0)),
                ],
                out_specs=pl.BlockSpec((b_tile, v_tile), lambda i, j: (i, j)),
            ),
            compiler_params=pltpu.CompilerParams(
                dimension_semantics=("parallel", "arbitrary"),
                vmem_limit_bytes=_vmem_limit(fin_est),
            ),
        )(acc, lse[:, :, None])
    else:
        mean_lse = jnp.mean(lse, axis=0)[:, None]             # (b_pad, 1)
        fin_est = 6 * slab + 2 * b_tile * 4
        out = pl.pallas_call(
            _finalize_mean_kernel,
            out_shape=jax.ShapeDtypeStruct((b_pad, v_pad), jnp.float32),
            grid_spec=pltpu.PrefetchScalarGridSpec(
                num_scalar_prefetch=0,
                grid=fin_grid,
                in_specs=[
                    pl.BlockSpec((b_tile, v_tile), lambda i, j: (i, j)),
                    pl.BlockSpec((b_tile, 1), lambda i, j: (i, 0)),
                ],
                out_specs=pl.BlockSpec((b_tile, v_tile), lambda i, j: (i, j)),
            ),
            compiler_params=pltpu.CompilerParams(
                dimension_semantics=("parallel", "arbitrary"),
                vmem_limit_bytes=_vmem_limit(fin_est),
            ),
        )(acc, mean_lse)

    if b_pad != B or v_pad != V:
        out = out[:B, :V]
    return out


# --------------------------------------------------------------------------
# Pure-JAX reference mirroring the PyTorch module.
# --------------------------------------------------------------------------
def _reference(hidden, weights, biases, *, raw_probs=False,
               compute_dtype=jnp.float32):
    h = hidden.astype(compute_dtype)
    w = weights.astype(compute_dtype)
    logits = jnp.einsum("kbh,kvh->kbv", h, w,
                        preferred_element_type=jnp.float32)
    logits = logits + biases[:, None, :].astype(jnp.float32)
    logp = jax.nn.log_softmax(logits, axis=-1)       # per-model generator output
    if raw_probs:
        return jnp.log(jnp.mean(jnp.exp(logp), axis=0))
    return jnp.mean(logp, axis=0)


if __name__ == "__main__":
    key = jax.random.PRNGKey(0)

    # --- Case 1: module-consistent small shapes (K=2 models, batch*seq=8,
    # hidden=32, target vocab=128).
    K, B, H, V = 2, 8, 32, 128
    k_h, k_w, k_b = jax.random.split(key, 3)
    hidden = jax.random.normal(k_h, (K, B, H), dtype=jnp.float32)
    weights = jax.random.normal(k_w, (K, V, H), dtype=jnp.float32) * 0.1
    biases = jax.random.normal(k_b, (K, V), dtype=jnp.float32) * 0.1

    # fp32 streaming path: tight tolerance vs fp32 reference (both modes).
    for raw in (False, True):
        out = jax.block_until_ready(
            ensemble_generator(hidden, weights, biases, raw_probs=raw,
                               compute_dtype=jnp.float32))
        ref = _reference(hidden, weights, biases, raw_probs=raw)
        np.testing.assert_allclose(np.asarray(out), np.asarray(ref),
                                   atol=1e-4, rtol=1e-4)

    # default bf16 streaming path, checked against a bf16-cast reference.
    for raw in (False, True):
        out = jax.block_until_ready(
            ensemble_generator(hidden, weights, biases, raw_probs=raw))
        ref = _reference(hidden, weights, biases, raw_probs=raw,
                         compute_dtype=jnp.bfloat16)
        np.testing.assert_allclose(np.asarray(out), np.asarray(ref),
                                   atol=1e-2, rtol=1e-2)

    # --- Case 2: non-aligned shapes + forced multi-tile grid (exercises
    # B/V padding, the V-tile loop, weight residency and both finalizes).
    K2, B2, H2, V2 = 3, 20, 32, 300
    k_h2, k_w2, k_b2 = jax.random.split(jax.random.PRNGKey(1), 3)
    hidden2 = jax.random.normal(k_h2, (K2, B2, H2), dtype=jnp.float32)
    weights2 = jax.random.normal(k_w2, (K2, V2, H2), dtype=jnp.float32) * 0.1
    biases2 = jax.random.normal(k_b2, (K2, V2), dtype=jnp.float32) * 0.1
    for raw in (False, True):
        out = jax.block_until_ready(
            ensemble_generator(hidden2, weights2, biases2, raw_probs=raw,
                               compute_dtype=jnp.float32,
                               b_tile=8, v_tile=128))
        ref = _reference(hidden2, weights2, biases2, raw_probs=raw)
        np.testing.assert_allclose(np.asarray(out), np.asarray(ref),
                                   atol=1e-4, rtol=1e-4)

    print("KERNEL_OK")
</pallas_src>

<mosaic_0001>
module attributes {stable_mosaic.version = 11 : i64} {
  func.func @_ensemble_logits_kernel(%arg0: i32, %arg1: i32, %arg2: memref<2x8x32xf32, #tpu.memory_space<vmem>>, %arg3: memref<2x32x128xf32, #tpu.memory_space<vmem>>, %arg4: memref<2x1x128xf32, #tpu.memory_space<vmem>>, %arg5: memref<8x128xf32, #tpu.memory_space<vmem>>, %arg6: memref<1x2x8x1xf32, #tpu.memory_space<vmem>>) attributes {dimension_semantics = [#tpu.dimension_semantics<arbitrary>, #tpu.dimension_semantics<parallel>], iteration_bounds = array<i64: 1, 1>, scalar_prefetch = 0 : i64, scratch_operands = 0 : i64, tpu.core_type = #tpu.core_type<tc>, window_params = [{transform_indices = @transform_0, window_bounds = array<i64: 2, 8, 32>}, {transform_indices = @transform_1, window_bounds = array<i64: 2, 32, 128>}, {transform_indices = @transform_2, window_bounds = array<i64: 2, 1, 128>}, {transform_indices = @transform_3, window_bounds = array<i64: 8, 128>}, {transform_indices = @transform_4, window_bounds = array<i64: 1, 2, 8, 1>}]} {
    %c0 = arith.constant 0 : index
    %c0_0 = arith.constant 0 : index
    %c0_1 = arith.constant 0 : index
    %0 = vector.load %arg2[%c0, %c0_0, %c0_1] : memref<2x8x32xf32, #tpu.memory_space<vmem>>, vector<1x8x32xf32>
    %1 = vector.shape_cast %0 : vector<1x8x32xf32> to vector<8x32xf32>
    %c0_2 = arith.constant 0 : index
    %c0_3 = arith.constant 0 : index
    %c0_4 = arith.constant 0 : index
    %2 = vector.load %arg3[%c0_2, %c0_3, %c0_4] : memref<2x32x128xf32, #tpu.memory_space<vmem>>, vector<1x32x128xf32>
    %3 = vector.shape_cast %2 : vector<1x32x128xf32> to vector<32x128xf32>
    %cst = arith.constant dense<0.000000e+00> : vector<8x128xf32>
    %4 = tpu.matmul %1, %3, %cst {dimension_numbers = #tpu.dot_dimension_numbers<[1], [0], [0], [1], [0, 0, 1, 1], [], []>} : vector<8x32xf32>, vector<32x128xf32>, vector<8x128xf32> -> vector<8x128xf32>
    %c0_5 = arith.constant 0 : index
    %c0_6 = arith.constant 0 : index
    %c0_7 = arith.constant 0 : index
    %5 = vector.load %arg4[%c0_5, %c0_6, %c0_7] : memref<2x1x128xf32, #tpu.memory_space<vmem>>, vector<1x1x128xf32>
    %6 = vector.shape_cast %5 : vector<1x1x128xf32> to vector<1x128xf32>
    %7 = vector.broadcast %6 : vector<1x128xf32> to vector<8x128xf32>
    %8 = arith.addf %4, %7 : vector<8x128xf32>
    %cst_8 = arith.constant dense<0xFF800000> : vector<8xf32>
    %9 = vector.multi_reduction <maximumf>, %8, %cst_8 [1] : vector<8x128xf32> to vector<8xf32>
    %10 = vector.shape_cast %9 : vector<8xf32> to vector<8x1xf32>
    %11 = vector.broadcast %10 : vector<8x1xf32> to vector<8x128xf32>
    %12 = arith.subf %8, %11 : vector<8x128xf32>
    %13 = math.exp %12 : vector<8x128xf32>
    %cst_9 = arith.constant dense<0.000000e+00> : vector<8xf32>
    %14 = vector.multi_reduction <add>, %13, %cst_9 [1] : vector<8x128xf32> to vector<8xf32>
    %15 = vector.shape_cast %14 : vector<8xf32> to vector<8x1xf32>
    %16 = math.log %15 : vector<8x1xf32>
    %17 = arith.addf %10, %16 : vector<8x1xf32>
    %c0_10 = arith.constant 0 : index
    %c0_11 = arith.constant 0 : index
    %c0_12 = arith.constant 0 : index
    %c0_13 = arith.constant 0 : index
    %18 = vector.load %arg6[%c0_10, %c0_11, %c0_12, %c0_13] : memref<1x2x8x1xf32, #tpu.memory_space<vmem>>, vector<1x1x8x1xf32>
    %19 = vector.shape_cast %18 : vector<1x1x8x1xf32> to vector<8x1xf32>
    %20 = vector.shape_cast %17 : vector<8x1xf32> to vector<1x1x8x1xf32>
    tpu.vector_store %arg6[%c0_10, %c0_11, %c0_12, %c0_13], %20 {strides = array<i32>} : memref<1x2x8x1xf32, #tpu.memory_space<vmem>>, vector<1x1x8x1xf32>,
    %cst_14 = arith.constant 5.000000e-01 : f32
    %21 = vector.broadcast %cst_14 : f32 to vector<8x128xf32>
    %22 = arith.mulf %8, %21 : vector<8x128xf32>
    %c0_15 = arith.constant 0 : index
    %c0_16 = arith.constant 0 : index
    %23 = vector.load %arg5[%c0_15, %c0_16] : memref<8x128xf32, #tpu.memory_space<vmem>>, vector<8x128xf32>
    tpu.vector_store %arg5[%c0_15, %c0_16], %22 {strides = array<i32>} : memref<8x128xf32, #tpu.memory_space<vmem>>, vector<8x128xf32>,
    %c1 = arith.constant 1 : index
    %c0_17 = arith.constant 0 : index
    %c0_18 = arith.constant 0 : index
    %24 = vector.load %arg2[%c1, %c0_17, %c0_18] : memref<2x8x32xf32, #tpu.memory_space<vmem>>, vector<1x8x32xf32>
    %25 = vector.shape_cast %24 : vector<1x8x32xf32> to vector<8x32xf32>
    %c1_19 = arith.constant 1 : index
    %c0_20 = arith.constant 0 : index
    %c0_21 = arith.constant 0 : index
    %26 = vector.load %arg3[%c1_19, %c0_20, %c0_21] : memref<2x32x128xf32, #tpu.memory_space<vmem>>, vector<1x32x128xf32>
    %27 = vector.shape_cast %26 : vector<1x32x128xf32> to vector<32x128xf32>
    %cst_22 = arith.constant dense<0.000000e+00> : vector<8x128xf32>
    %28 = tpu.matmul %25, %27, %cst_22 {dimension_numbers = #tpu.dot_dimension_numbers<[1], [0], [0], [1], [0, 0, 1, 1], [], []>} : vector<8x32xf32>, vector<32x128xf32>, vector<8x128xf32> -> vector<8x128xf32>
    %c1_23 = arith.constant 1 : index
    %c0_24 = arith.constant 0 : index
    %c0_25 = arith.constant 0 : index
    %29 = vector.load %arg4[%c1_23, %c0_24, %c0_25] : memref<2x1x128xf32, #tpu.memory_space<vmem>>, vector<1x1x128xf32>
    %30 = vector.shape_cast %29 : vector<1x1x128xf32> to vector<1x128xf32>
    %31 = vector.broadcast %30 : vector<1x128xf32> to vector<8x128xf32>
    %32 = arith.addf %28, %31 : vector<8x128xf32>
    %cst_26 = arith.constant dense<0xFF800000> : vector<8xf32>
    %33 = vector.multi_reduction <maximumf>, %32, %cst_26 [1] : vector<8x128xf32> to vector<8xf32>
    %34 = vector.shape_cast %33 : vector<8xf32> to vector<8x1xf32>
    %35 = vector.broadcast %34 : vector<8x1xf32> to vector<8x128xf32>
    %36 = arith.subf %32, %35 : vector<8x128xf32>
    %37 = math.exp %36 : vector<8x128xf32>
    %cst_27 = arith.constant dense<0.000000e+00> : vector<8xf32>
    %38 = vector.multi_reduction <add>, %37, %cst_27 [1] : vector<8x128xf32> to vector<8xf32>
    %39 = vector.shape_cast %38 : vector<8xf32> to vector<8x1xf32>
    %40 = math.log %39 : vector<8x1xf32>
    %41 = arith.addf %34, %40 : vector<8x1xf32>
    %c0_28 = arith.constant 0 : index
    %c1_29 = arith.constant 1 : index
    %c0_30 = arith.constant 0 : index
    %c0_31 = arith.constant 0 : index
    %42 = vector.load %arg6[%c0_28, %c1_29, %c0_30, %c0_31] : memref<1x2x8x1xf32, #tpu.memory_space<vmem>>, vector<1x1x8x1xf32>
    %43 = vector.shape_cast %42 : vector<1x1x8x1xf32> to vector<8x1xf32>
    %44 = vector.shape_cast %41 : vector<8x1xf32> to vector<1x1x8x1xf32>
    tpu.vector_store %arg6[%c0_28, %c1_29, %c0_30, %c0_31], %44 {strides = array<i32>} : memref<1x2x8x1xf32, #tpu.memory_space<vmem>>, vector<1x1x8x1xf32>,
    %c0_32 = arith.constant 0 : index
    %c0_33 = arith.constant 0 : index
    %45 = vector.load %arg5[%c0_32, %c0_33] : memref<8x128xf32, #tpu.memory_space<vmem>>, vector<8x128xf32>
    %cst_34 = arith.constant 5.000000e-01 : f32
    %46 = vector.broadcast %cst_34 : f32 to vector<8x128xf32>
    %47 = arith.mulf %32, %46 : vector<8x128xf32>
    %48 = arith.addf %45, %47 : vector<8x128xf32>
    %c0_35 = arith.constant 0 : index
    %c0_36 = arith.constant 0 : index
    %49 = vector.load %arg5[%c0_35, %c0_36] : memref<8x128xf32, #tpu.memory_space<vmem>>, vector<8x128xf32>
    tpu.vector_store %arg5[%c0_35, %c0_36], %48 {strides = array<i32>} : memref<8x128xf32, #tpu.memory_space<vmem>>, vector<8x128xf32>,
    return
  }
  func.func @transform_0(%arg0: i32, %arg1: i32) -> (i32, i32, i32) {
    %c0_i32 = arith.constant 0 : i32
    %c0_i32_0 = arith.constant 0 : i32
    %c0_i32_1 = arith.constant 0 : i32
    return %c0_i32, %arg1, %c0_i32_0 : i32, i32, i32
  }
  func.func @transform_1(%arg0: i32, %arg1: i32) -> (i32, i32, i32) {
    %c0_i32 = arith.constant 0 : i32
    %c0_i32_0 = arith.constant 0 : i32
    %c0_i32_1 = arith.constant 0 : i32
    return %c0_i32, %c0_i32_0, %arg0 : i32, i32, i32
  }
  func.func @transform_2(%arg0: i32, %arg1: i32) -> (i32, i32, i32) {
    %c0_i32 = arith.constant 0 : i32
    %c0_i32_0 = arith.constant 0 : i32
    %c0_i32_1 = arith.constant 0 : i32
    return %c0_i32, %c0_i32_0, %arg0 : i32, i32, i32
  }
  func.func @transform_3(%arg0: i32, %arg1: i32) -> (i32, i32) {
    %c0_i32 = arith.constant 0 : i32
    return %arg1, %arg0 : i32, i32
  }
  func.func @transform_4(%arg0: i32, %arg1: i32) -> (i32, i32, i32, i32) {
    %c0_i32 = arith.constant 0 : i32
    %c0_i32_0 = arith.constant 0 : i32
    %c0_i32_1 = arith.constant 0 : i32
    return %arg0, %c0_i32, %arg1, %c0_i32_0 : i32, i32, i32, i32
  }
}

</mosaic_0001>

<llo_original>
// kernel: tpu_custom_call.1
$region0: #{tpu_custom_call.1}
  #allocation0 [shape = 'u32[]', space=smem, size = 0x4, offset = 0x4, fixed_abs, tag = 'smem constant byte address 0x4 - core index']
  #allocation1 [shape = 'u32[72,128]{1,0:T(1,128)}', space=vmem, size = 0x9000, scoped, tag = 'internal scratch']
  %s0 = inlined_call_operand.hbm [shape: f32[2,8,32], index: 0, kind: input, shape index: {}]
  %s1 = inlined_call_operand.hbm [shape: f32[2,32,128], index: 1, kind: input, shape index: {}]
  %s2 = inlined_call_operand.hbm [shape: f32[2,1,128], index: 2, kind: input, shape index: {}]
  %s3 = inlined_call_operand.hbm [shape: f32[8,128], index: 3, kind: output, shape index: {0}]
  %s4 = inlined_call_operand.vmem [shape: f32[1,2,8,1], index: 4, kind: output, shape index: {1}]
  %5 = xla_tuple %s3, %s4
  %s6 = sld [smem:[#allocation0]]
  $region42: #{tpu_custom_call.1} parent=0
    _
  %s8 = ssub.s32 1, %s6
  %s9 = scalar_select 0, %s8, %s6
  $region1: #{tpu_custom_call.1} parent=0
    #allocation2 [shape = 'u8[8192]{0}', space=vmem, size = 0x2000, scoped, tag = 'input window, operand 0, single buffered']
    #allocation3 [shape = 's32[1]{0}', space=sflag, size = 0x4, scoped, tag = 'scoped memory for tpu_custom_call.1']
    #allocation4 [shape = 's32[1]{0}', space=sflag, size = 0x4, scoped, tag = 'scoped memory for tpu_custom_call.1']
    #allocation5 [shape = 'u8[32768]{0}', space=vmem, size = 0x8000, scoped, tag = 'input window, operand 1, single buffered']
    #allocation6 [shape = 's32[1]{0}', space=sflag, size = 0x4, scoped, tag = 'scoped memory for tpu_custom_call.1']
    #allocation7 [shape = 'u8[1024]{0}', space=vmem, size = 0x400, scoped, tag = 'input window, operand 2, single buffered']
    #allocation8 [shape = 'u8[4096]{0}', space=vmem, size = 0x1000, scoped, tag = 'output window, operand 0, single buffered']
    %10 = vsyncpa [#allocation3], 0
    %11 = vsyncpa [#allocation6], 0
    %12 = vsyncpa [#allocation4], 0
    // Predicated region
    $region2: #{tpu_custom_call.1} parent=1 // pred_check
      _
    $region3: #{tpu_custom_call.1} parent=1 // pred_check_branch
      %14 = sbr.rel (0) target = $region5
    $region4: #{tpu_custom_call.1} parent=1 // pred_region
      %16 = vsyncadd [#allocation3], 0
      %s17 = sshll.u32 %s0, 4
      %s18 = int_to_ptr.hbm [resolvable:$true] %s17
      %s19 = sshll.u32 [#allocation2], 4
      %s20 = int_to_ptr.vmem [resolvable:$true] %s19
      %25 = dma.hbm_to_vmem [thread:$0]  %s18, 256, %s20, [#allocation3], 128, 128, 8
    $region5: #{tpu_custom_call.1} parent=1 // pred_fallthru
      _
    // Predicated region
    $region6: #{tpu_custom_call.1} parent=1 // pred_check
      _
    $region7: #{tpu_custom_call.1} parent=1 // pred_check_branch
      %27 = sbr.rel (0) target = $region9
    $region8: #{tpu_custom_call.1} parent=1 // pred_region
      %29 = vsyncadd [#allocation6], 0
      %s30 = sshll.u32 %s1, 4
      %s31 = int_to_ptr.hbm [resolvable:$true] %s30
      %s32 = sshll.u32 [#allocation5], 4
      %s33 = int_to_ptr.vmem [resolvable:$true] %s32
      %38 = dma.hbm_to_vmem [thread:$0]  %s31, 1024, %s33, [#allocation6], 128, 128, 8
    $region9: #{tpu_custom_call.1} parent=1 // pred_fallthru
      _
    // Predicated region
    $region10: #{tpu_custom_call.1} parent=1 // pred_check
      _
    $region11: #{tpu_custom_call.1} parent=1 // pred_check_branch
      %40 = sbr.rel (0) target = $region13
    $region12: #{tpu_custom_call.1} parent=1 // pred_region
      %42 = vsyncadd [#allocation6], 0
      %s43 = sshll.u32 %s2, 4
      %s44 = int_to_ptr.hbm [resolvable:$true] %s43
      %s45 = sshll.u32 [#allocation7], 4
      %s46 = int_to_ptr.vmem [resolvable:$true] %s45
      %51 = dma.hbm_to_vmem [thread:$0]  %s44, 32, %s46, [#allocation6], 16, 16, 1
    $region13: #{tpu_custom_call.1} parent=1 // pred_fallthru
      _
    // Predicated region
    $region14: #{tpu_custom_call.1} parent=1 // pred_check
      _
    $region15: #{tpu_custom_call.1} parent=1 // pred_check_branch
      %53 = sbr.rel (0) target = $region17
    $region16: #{tpu_custom_call.1} parent=1 // pred_region
      %55 = dma.done [#allocation3], 256
    $region17: #{tpu_custom_call.1} parent=1 // pred_fallthru
      _
    // Predicated region
    $region18: #{tpu_custom_call.1} parent=1 // pred_check
      _
    $region19: #{tpu_custom_call.1} parent=1 // pred_check_branch
      %57 = sbr.rel (0) target = $region21
    $region20: #{tpu_custom_call.1} parent=1 // pred_region
      %59 = dma.done [#allocation6], 1024
    $region21: #{tpu_custom_call.1} parent=1 // pred_fallthru
      _
    // Predicated region
    $region22: #{tpu_custom_call.1} parent=1 // pred_check
      _
    $region23: #{tpu_custom_call.1} parent=1 // pred_check_branch
      %61 = sbr.rel (0) target = $region25
    $region24: #{tpu_custom_call.1} parent=1 // pred_region
      %63 = dma.done [#allocation6], 32
    $region25: #{tpu_custom_call.1} parent=1 // pred_fallthru
      _
    %v64 = vld [vmem:[#allocation2] sm:$0xff]
    %v65 = vld [vmem:[#allocation5] sm:$0xff]
    %v66 = vld [vmem:[#allocation5 + $0x8] sm:$0xff]
    %v67 = vld [vmem:[#allocation5 + $0x10] sm:$0xff]
    %v68 = vld [vmem:[#allocation5 + $0x18] sm:$0xff]
    %v69 = vld [vmem:[#allocation7] sm:$0x1]
    %v71 = vperm.slane %v69, 0
    %vm73 = vcmask 261120
    %v75 = vsel %vm73, %v64, 0
    %77 = vmatpush.msra.mxu0 0.0
    %78 = vmatpush.msra.mxu0 0.0
    %79 = vmatpush.msra.mxu0 0.0
    %80 = vmatpush.msra.mxu0 0.0
    %81 = vmatpush.msra.mxu0 0.0
    %82 = vmatpush.msra.mxu0 0.0
    %83 = vmatpush.msra.mxu0 0.0
    %84 = vmatpush.msra.mxu0 0.0
    %85 = vmatpush.msra.mxu0 0.0
    %86 = vmatpush.msra.mxu0 0.0
    %87 = vmatpush.msra.mxu0 0.0
    %88 = vmatpush.msra.mxu0 0.0
    %89 = vmatpush.msra.mxu0 %v68
    %90 = vmatpush.msra.mxu0 %v67
    %91 = vmatpush.msra.mxu0 %v66
    %92 = vmatpush.msra.mxu0 %v65
    %93 = vmatmul.f32.gmra.mxu0 %v75
    %v94 = vpop.f32.mrf.mxu0
    %v95 = vadd.f32 %v71, %v94
    %96 = vdwg.mxu0
    %97 = vmax.xlane.f32.xlu0 %v95
    %v98 = vpop.xlane.xlu0 %97
    %v99 = vsub.f32 %v95, %v98
    %v100 = vmul.f32 %v99, 1.442695
    %v101 = vpow.pop %v100
    %102 = vadd.xlane.f32.xlu0 %v101
    %v103 = vpop.xlane.xlu0 %102
    %v104 = vlog2.pop %v103
    %v105 = vmul.f32 %v104, 0.6931472
    %v106 = vadd.f32 %v98, %v105
    %vm107 = vcmask 7168
    %108 = vst.msk [vmem:[%s4] sm:$0xff] %vm107, %v106
    %v109 = vmul.f32 %v95, 0.5
    %110 = vst [vmem:[#allocation8] sm:$0xff] %v109
    %s111 = scalar_lea.vmem [#allocation2], 8
    %v112 = vld [vmem:[%s111] sm:$0xff]
    %s113 = scalar_lea.vmem [#allocation5], 32
    %v114 = vld [vmem:[%s113] sm:$0xff]
    %v115 = vld [vmem:[%s113 + $0x8] sm:$0xff]
    %v116 = vld [vmem:[%s113 + $0x10] sm:$0xff]
    %v117 = vld [vmem:[%s113 + $0x18] sm:$0xff]
    %s118 = scalar_lea.vmem [#allocation7], 1
    %v119 = vld [vmem:[%s118] sm:$0x1]
    %v121 = vperm.slane %v119, 0
    %v124 = vsel %vm73, %v112, 0
    %126 = vmatpush.msra.mxu0 0.0
    %127 = vmatpush.msra.mxu0 0.0
    %128 = vmatpush.msra.mxu0 0.0
    %129 = vmatpush.msra.mxu0 0.0
    %130 = vmatpush.msra.mxu0 0.0
    %131 = vmatpush.msra.mxu0 0.0
    %132 = vmatpush.msra.mxu0 0.0
    %133 = vmatpush.msra.mxu0 0.0
    %134 = vmatpush.msra.mxu0 0.0
    %135 = vmatpush.msra.mxu0 0.0
    %136 = vmatpush.msra.mxu0 0.0
    %137 = vmatpush.msra.mxu0 0.0
    %138 = vmatpush.msra.mxu0 %v117
    %139 = vmatpush.msra.mxu0 %v116
    %140 = vmatpush.msra.mxu0 %v115
    %141 = vmatpush.msra.mxu0 %v114
    %142 = vmatmul.f32.gmra.mxu0 %v124
    %v143 = vpop.f32.mrf.mxu0
    %v144 = vadd.f32 %v121, %v143
    %145 = vdwg.mxu0
    %146 = vmax.xlane.f32.xlu0 %v144
    %v147 = vpop.xlane.xlu0 %146
    %v148 = vsub.f32 %v144, %v147
    %v149 = vmul.f32 %v148, 1.442695
    %v150 = vpow.pop %v149
    %151 = vadd.xlane.f32.xlu0 %v150
    %v152 = vpop.xlane.xlu0 %151
    %v153 = vlog2.pop %v152
    %v154 = vmul.f32 %v153, 0.6931472
    %v155 = vadd.f32 %v147, %v154
    %s156 = scalar_lea.vmem %s4, 8
    %157 = vst.msk [vmem:[%s156] sm:$0xff] %vm107, %v155
    %v158 = vld [vmem:[#allocation8] sm:$0xff]
    %v159 = vmul.f32 %v144, 0.5
    %v160 = vadd.f32 %v158, %v159
    %161 = vst [vmem:[#allocation8] sm:$0xff] %v160
    // Predicated region
    $region26: #{tpu_custom_call.1} parent=1 // pred_check
      _
    $region27: #{tpu_custom_call.1} parent=1 // pred_check_branch
      %163 = sbr.rel (0) target = $region29
    $region28: #{tpu_custom_call.1} parent=1 // pred_region
      %165 = vsyncadd [#allocation4], 0
      %s167 = sshll.u32 [#allocation8], 4
      %s168 = int_to_ptr.vmem [resolvable:$true] %s167
      %s169 = sshll.u32 %s3, 4
      %s170 = int_to_ptr.hbm [resolvable:$true] %s169
      %172 = dma.vmem_to_hbm [thread:$0]  %s168, 128, %s170, [#allocation4]
    $region29: #{tpu_custom_call.1} parent=1 // pred_fallthru
      _
    // Predicated region
    $region30: #{tpu_custom_call.1} parent=1 // pred_check
      _
    $region31: #{tpu_custom_call.1} parent=1 // pred_check_branch
      %174 = sbr.rel (0) target = $region33
    $region32: #{tpu_custom_call.1} parent=1 // pred_region
      _
    $region33: #{tpu_custom_call.1} parent=1 // pred_fallthru
      _
    // Predicated region
    $region34: #{tpu_custom_call.1} parent=1 // pred_check
      _
    $region35: #{tpu_custom_call.1} parent=1 // pred_check_branch
      %176 = sbr.rel (0) target = $region37
    $region36: #{tpu_custom_call.1} parent=1 // pred_region
      %178 = dma.done [#allocation4], 128
    $region37: #{tpu_custom_call.1} parent=1 // pred_fallthru
      _
    // Predicated region
    $region38: #{tpu_custom_call.1} parent=1 // pred_check
      _
    $region39: #{tpu_custom_call.1} parent=1 // pred_check_branch
      %180 = sbr.rel (0) target = $region41
    $region40: #{tpu_custom_call.1} parent=1 // pred_region
      _
    $region41: #{tpu_custom_call.1} parent=1 // pred_fallthru
      _
    %181 = vsyncpa [#allocation3], 1
    %182 = vsyncpa [#allocation6], 1
    %183 = vsyncpa [#allocation4], 1

</llo_original>
